<compile_context>
chip_gen: v7x
topology: tpu7x:2x2x1
jax: 0.10.0
libtpu: 0.0.40
codegen_flags: <defaults>
</compile_context>

<pallas_src>
import functools

import jax
import jax.numpy as jnp
from jax.experimental import pallas as pl
from jax.experimental.pallas import tpu as pltpu

STD = 0.3989422804     # fixed std of the decoded Normal
LN_EPS = 1e-3          # torch.nn.LayerNorm(eps=1e-3)


def _round_up(x, m):
    return (x + m - 1) // m * m


def _mlp_kernel(x_ref, w1_ref, w2_ref, w3_ref, lnp_ref, b3_ref, out_ref, *,
                h_true, h_pad):
    """One (tm, F) row tile -> (tm, out_dim).

    Matmuls run on the MXU with bf16 operands and f32 accumulation; LayerNorm and
    ELU stay in f32.  Hidden columns >= h_true carry zero weights/biases, so their
    contribution to the LayerNorm variance is removed with an exact scalar
    correction instead of a mask multiply.
    """
    inv_h = jnp.float32(1.0 / h_true)

    lnp = lnp_ref[...]                       # (6, Hp) f32, resident across the grid
    b1, g1, beta1 = lnp[0:1], lnp[1:2], lnp[2:3]
    b2, g2, beta2 = lnp[3:4], lnp[4:5], lnp[5:6]

    def dense_ln_elu(h_bf16, w_ref, b, g, beta):
        # Linear (bf16 x bf16 -> f32 accumulate).
        h = jnp.dot(h_bf16, w_ref[...], preferred_element_type=jnp.float32) + b
        # LayerNorm over the true hidden width (biased variance, like torch.nn.LayerNorm).
        mu = jnp.sum(h, axis=-1, keepdims=True) * inv_h   # padded columns are exactly 0
        d = h - mu
        ss = jnp.sum(d * d, axis=-1, keepdims=True)
        if h_pad != h_true:
            # Each padded column contributes exactly mu^2 to sum(d*d); subtract it.
            ss = ss - jnp.float32(h_pad - h_true) * (mu * mu)
        var = ss * inv_h
        h = d * jax.lax.rsqrt(var + LN_EPS) * g + beta    # g = beta = 0 on padded cols
        # ELU (alpha = 1).  exp() overflow for large positive h sits in the unselected
        # branch and is discarded by the select; padded columns stay exactly 0.
        return jnp.where(h > 0.0, h, jnp.exp(h) - 1.0)

    h = dense_ln_elu(x_ref[...].astype(jnp.bfloat16), w1_ref, b1, g1, beta1)
    h = dense_ln_elu(h.astype(jnp.bfloat16), w2_ref, b2, g2, beta2)
    y = jnp.dot(h.astype(jnp.bfloat16), w3_ref[...],
                preferred_element_type=jnp.float32) + b3_ref[...]
    out_ref[...] = y.astype(out_ref.dtype)


def init_params(key, in_dim, out_dim, hidden_dim):
    """Deterministic synthetic parameters (shapes match the MLP head with 2 hidden layers)."""
    ks = jax.random.split(key, 6)
    scale1 = 1.0 / jnp.sqrt(in_dim)
    scale2 = 1.0 / jnp.sqrt(hidden_dim)
    return dict(
        w1=jax.random.uniform(ks[0], (in_dim, hidden_dim), jnp.float32, -scale1, scale1),
        b1=jax.random.uniform(ks[1], (1, hidden_dim), jnp.float32, -scale1, scale1),
        g1=jnp.ones((1, hidden_dim), jnp.float32),
        beta1=jnp.zeros((1, hidden_dim), jnp.float32),
        w2=jax.random.uniform(ks[2], (hidden_dim, hidden_dim), jnp.float32, -scale2, scale2),
        b2=jax.random.uniform(ks[3], (1, hidden_dim), jnp.float32, -scale2, scale2),
        g2=jnp.ones((1, hidden_dim), jnp.float32),
        beta2=jnp.zeros((1, hidden_dim), jnp.float32),
        w3=jax.random.uniform(ks[4], (hidden_dim, out_dim), jnp.float32, -scale2, scale2),
        b3=jax.random.uniform(ks[5], (1, out_dim), jnp.float32, -scale2, scale2),
    )


@functools.partial(jax.jit, static_argnames=("out_dim", "tm"))
def multi_decoder_mlp_forward(features, params, *, out_dim=1, tm=None):
    """MLP / vector head of MultiDecoder_v3.

    features: (T, B, I, F), ideally bf16 (halves the streamed activation bytes).
    Returns (loc, scale) of the predicted Normal; loc has shape (T, B, I) if
    out_dim == 1, else (T, B, I, out_dim).
    tm: row tile.  If None, auto-sized so the grid has >= 8 steps when possible
    (>= 4 per TensorCore on v7x under dimension_semantics=("parallel",)).
    """
    T, B, I, F = features.shape
    N = T * B * I
    H = params["w1"].shape[1]
    Hp = _round_up(H, 128)           # weights padded in the hidden dim only

    if tm is None:
        tm = 8
        for cand in (256, 128, 64, 32, 16, 8):
            if pl.cdiv(N, cand) >= 8:
                tm = cand
                break
    grid = (pl.cdiv(N, tm),)         # trailing partial row tile handled by Pallas

    def pad2(a, rows, cols, dtype):
        r, c = rows - a.shape[0], cols - a.shape[1]
        if r or c:
            a = jnp.pad(a, ((0, r), (0, c)))
        return a.astype(dtype)

    # Activations: no pad, no cast — stream at native dtype / true F.
    x = features.reshape(N, F)

    bf16, f32 = jnp.bfloat16, jnp.float32
    w1 = pad2(params["w1"], F, Hp, bf16)           # (F,  Hp)
    w2 = pad2(params["w2"], Hp, Hp, bf16)          # (Hp, Hp)
    w3 = pad2(params["w3"], Hp, out_dim, bf16)     # (Hp, out_dim) — narrow output
    lnp = jnp.concatenate([params["b1"], params["g1"], params["beta1"],
                           params["b2"], params["g2"], params["beta2"]], axis=0)
    lnp = pad2(lnp, 6, Hp, f32)                    # (6, Hp) stacked LN params / biases
    b3 = params["b3"].astype(f32)                  # (1, out_dim)

    full = lambda shape: pl.BlockSpec(shape, lambda i: (0, 0))
    kernel = functools.partial(_mlp_kernel, h_true=H, h_pad=Hp)

    itemsize = jnp.dtype(features.dtype).itemsize
    n_rows = grid[0] * tm
    cost = pl.CostEstimate(
        flops=2 * n_rows * (F * Hp + Hp * Hp + Hp * out_dim),
        transcendentals=2 * n_rows * Hp,                       # two ELU layers
        bytes_accessed=(N * F * itemsize                       # activations in
                        + 2 * (F * Hp + Hp * Hp + Hp * out_dim)  # bf16 weights
                        + 4 * (6 * Hp + out_dim)                 # LN params / biases
                        + N * out_dim * 4),                      # f32 output
    )

    # Weights use constant index_maps so they stay resident in VMEM; as bf16 they fit
    # comfortably in the 32 MiB budget even at real dreamer dims.
    loc_flat = pl.pallas_call(
        kernel,
        out_shape=jax.ShapeDtypeStruct((N, out_dim), jnp.float32),
        grid_spec=pltpu.PrefetchScalarGridSpec(
            num_scalar_prefetch=0,
            grid=grid,
            in_specs=[
                pl.BlockSpec((tm, F), lambda i: (i, 0)),       # x row tile (true F)
                full((F, Hp)),                                 # w1
                full((Hp, Hp)),                                # w2
                full((Hp, out_dim)),                           # w3
                full((6, Hp)),                                 # stacked b/gamma/beta (L1, L2)
                full((1, out_dim)),                            # b3
            ],
            out_specs=pl.BlockSpec((tm, out_dim), lambda i: (i, 0)),
        ),
        compiler_params=pltpu.CompilerParams(
            dimension_semantics=("parallel",),      # shard row tiles across TCs (v7x)
            vmem_limit_bytes=32 * 1024 * 1024,      # headroom vs v7x's 64 MiB physical
        ),
        cost_estimate=cost,
    )(x, w1, w2, w3, lnp, b3)

    loc = loc_flat.reshape(T, B, I, out_dim)
    if out_dim == 1:
        loc = loc.reshape(T, B, I)   # flatten the trailing singleton, like the torch module
    scale = jnp.full_like(loc, STD)
    return loc, scale


def _reference_forward(features, params, out_dim):
    """Pure-JAX f32 reference of the same MLP head (for a tolerance check)."""
    T, B, I, F = features.shape
    x = features.reshape(-1, F).astype(jnp.float32)

    def layer(h, w, b, g, beta):
        h = h @ w + b
        mu = jnp.mean(h, axis=-1, keepdims=True)
        var = jnp.mean((h - mu) ** 2, axis=-1, keepdims=True)
        h = (h - mu) / jnp.sqrt(var + LN_EPS) * g + beta
        return jnp.where(h > 0, h, jnp.exp(jnp.minimum(h, 0.0)) - 1.0)

    h = layer(x, params["w1"], params["b1"], params["g1"], params["beta1"])
    h = layer(h, params["w2"], params["b2"], params["g2"], params["beta2"])
    y = h @ params["w3"] + params["b3"]
    loc = y.reshape(T, B, I, out_dim)
    if out_dim == 1:
        loc = loc.reshape(T, B, I)
    return loc


if __name__ == "__main__":
    # Small TBIF feature shapes.  hidden=96 is deliberately NOT a 128 multiple so the
    # padded-H / corrected-variance LayerNorm path is exercised.  N = T*B*I = 512 ->
    # auto tm=64, grid of 8 row tiles (>= 4 steps per v7x TensorCore).
    T, B, I, F = 8, 8, 8, 64
    HIDDEN = 96
    OUT_DIM = 1

    key = jax.random.PRNGKey(0)
    k_feat, k_par = jax.random.split(key)
    # bf16 features: the kernel streams them directly (only per-step operand -> half bytes).
    features = jax.random.normal(k_feat, (T, B, I, F), jnp.float32).astype(jnp.bfloat16)
    params = init_params(k_par, F, OUT_DIM, HIDDEN)

    loc, scale = multi_decoder_mlp_forward(features, params, out_dim=OUT_DIM)
    jax.block_until_ready((loc, scale))

    assert loc.shape == (T, B, I)
    assert scale.shape == (T, B, I)

    # Numerical check against the f32 reference (bf16 matmuls -> loose tolerance).
    loc_ref = _reference_forward(features, params, OUT_DIM)
    max_err = float(jnp.max(jnp.abs(loc - loc_ref)))
    assert max_err < 0.1, f"kernel deviates from reference: max_err={max_err}"

    print("KERNEL_OK")
</pallas_src>

<mosaic_0001>
module attributes {stable_mosaic.version = 11 : i64} {
  func.func @_mlp_kernel(%arg0: i32, %arg1: memref<64x64xbf16, #tpu.memory_space<vmem>>, %arg2: memref<64x128xbf16, #tpu.memory_space<vmem>>, %arg3: memref<128x128xbf16, #tpu.memory_space<vmem>>, %arg4: memref<128x1xbf16, #tpu.memory_space<vmem>>, %arg5: memref<6x128xf32, #tpu.memory_space<vmem>>, %arg6: memref<1x1xf32, #tpu.memory_space<vmem>>, %arg7: memref<64x1xf32, #tpu.memory_space<vmem>>) attributes {dimension_semantics = [#tpu.dimension_semantics<parallel>], iteration_bounds = array<i64: 8>, scalar_prefetch = 0 : i64, scratch_operands = 0 : i64, tpu.core_type = #tpu.core_type<tc>, window_params = [{transform_indices = @transform_0, window_bounds = array<i64: 64, 64>}, {pipeline_mode = #tpu.pipeline_mode<synchronous>, transform_indices = @transform_1, window_bounds = array<i64: 64, 128>}, {pipeline_mode = #tpu.pipeline_mode<synchronous>, transform_indices = @transform_2, window_bounds = array<i64: 128, 128>}, {pipeline_mode = #tpu.pipeline_mode<synchronous>, transform_indices = @transform_3, window_bounds = array<i64: 128, 1>}, {pipeline_mode = #tpu.pipeline_mode<synchronous>, transform_indices = @transform_4, window_bounds = array<i64: 6, 128>}, {pipeline_mode = #tpu.pipeline_mode<synchronous>, transform_indices = @transform_5, window_bounds = array<i64: 1, 1>}, {transform_indices = @transform_6, window_bounds = array<i64: 64, 1>}]} {
    %c0 = arith.constant 0 : index
    %c0_0 = arith.constant 0 : index
    %0 = vector.load %arg5[%c0, %c0_0] : memref<6x128xf32, #tpu.memory_space<vmem>>, vector<6x128xf32>
    %1 = vector.extract_strided_slice %0 {offsets = [0, 0], sizes = [1, 128], strides = [1, 1]} : vector<6x128xf32> to vector<1x128xf32>
    %2 = vector.extract_strided_slice %0 {offsets = [1, 0], sizes = [1, 128], strides = [1, 1]} : vector<6x128xf32> to vector<1x128xf32>
    %3 = vector.extract_strided_slice %0 {offsets = [2, 0], sizes = [1, 128], strides = [1, 1]} : vector<6x128xf32> to vector<1x128xf32>
    %4 = vector.extract_strided_slice %0 {offsets = [3, 0], sizes = [1, 128], strides = [1, 1]} : vector<6x128xf32> to vector<1x128xf32>
    %5 = vector.extract_strided_slice %0 {offsets = [4, 0], sizes = [1, 128], strides = [1, 1]} : vector<6x128xf32> to vector<1x128xf32>
    %6 = vector.extract_strided_slice %0 {offsets = [5, 0], sizes = [1, 128], strides = [1, 1]} : vector<6x128xf32> to vector<1x128xf32>
    %c0_1 = arith.constant 0 : index
    %c0_2 = arith.constant 0 : index
    %7 = vector.load %arg1[%c0_1, %c0_2] : memref<64x64xbf16, #tpu.memory_space<vmem>>, vector<64x64xbf16>
    %c0_3 = arith.constant 0 : index
    %c0_4 = arith.constant 0 : index
    %8 = vector.load %arg2[%c0_3, %c0_4] : memref<64x128xbf16, #tpu.memory_space<vmem>>, vector<64x128xbf16>
    %cst = arith.constant dense<0.000000e+00> : vector<64x128xf32>
    %9 = tpu.matmul %7, %8, %cst {dimension_numbers = #tpu.dot_dimension_numbers<[1], [0], [0], [1], [0, 0, 1, 1], [], []>} : vector<64x64xbf16>, vector<64x128xbf16>, vector<64x128xf32> -> vector<64x128xf32>
    %10 = vector.broadcast %1 : vector<1x128xf32> to vector<64x128xf32>
    %11 = arith.addf %9, %10 : vector<64x128xf32>
    %cst_5 = arith.constant dense<0.000000e+00> : vector<64xf32>
    %12 = vector.multi_reduction <add>, %11, %cst_5 [1] : vector<64x128xf32> to vector<64xf32>
    %13 = vector.shape_cast %12 : vector<64xf32> to vector<64x1xf32>
    %cst_6 = arith.constant 0.010416667 : f32
    %14 = vector.broadcast %cst_6 : f32 to vector<64x1xf32>
    %15 = arith.mulf %13, %14 : vector<64x1xf32>
    %16 = vector.broadcast %15 : vector<64x1xf32> to vector<64x128xf32>
    %17 = arith.subf %11, %16 : vector<64x128xf32>
    %18 = arith.mulf %17, %17 : vector<64x128xf32>
    %cst_7 = arith.constant dense<0.000000e+00> : vector<64xf32>
    %19 = vector.multi_reduction <add>, %18, %cst_7 [1] : vector<64x128xf32> to vector<64xf32>
    %20 = vector.shape_cast %19 : vector<64xf32> to vector<64x1xf32>
    %21 = arith.mulf %15, %15 : vector<64x1xf32>
    %cst_8 = arith.constant 3.200000e+01 : f32
    %22 = vector.broadcast %cst_8 : f32 to vector<64x1xf32>
    %23 = arith.mulf %22, %21 : vector<64x1xf32>
    %24 = arith.subf %20, %23 : vector<64x1xf32>
    %cst_9 = arith.constant 0.010416667 : f32
    %25 = vector.broadcast %cst_9 : f32 to vector<64x1xf32>
    %26 = arith.mulf %24, %25 : vector<64x1xf32>
    %cst_10 = arith.constant 1.000000e-03 : f32
    %27 = vector.broadcast %cst_10 : f32 to vector<64x1xf32>
    %28 = arith.addf %26, %27 : vector<64x1xf32>
    %29 = math.rsqrt %28 : vector<64x1xf32>
    %30 = vector.broadcast %29 : vector<64x1xf32> to vector<64x128xf32>
    %31 = arith.mulf %17, %30 : vector<64x128xf32>
    %32 = vector.broadcast %2 : vector<1x128xf32> to vector<64x128xf32>
    %33 = arith.mulf %31, %32 : vector<64x128xf32>
    %34 = vector.broadcast %3 : vector<1x128xf32> to vector<64x128xf32>
    %35 = arith.addf %33, %34 : vector<64x128xf32>
    %cst_11 = arith.constant 0.000000e+00 : f32
    %36 = vector.broadcast %cst_11 : f32 to vector<64x128xf32>
    %37 = arith.cmpf ogt, %35, %36 : vector<64x128xf32>
    %38 = math.exp %35 : vector<64x128xf32>
    %cst_12 = arith.constant 1.000000e+00 : f32
    %39 = vector.broadcast %cst_12 : f32 to vector<64x128xf32>
    %40 = arith.subf %38, %39 : vector<64x128xf32>
    %41 = arith.select %37, %35, %40 : vector<64x128xi1>, vector<64x128xf32>
    %42 = arith.truncf %41 : vector<64x128xf32> to vector<64x128xbf16>
    %c0_13 = arith.constant 0 : index
    %c0_14 = arith.constant 0 : index
    %43 = vector.load %arg3[%c0_13, %c0_14] : memref<128x128xbf16, #tpu.memory_space<vmem>>, vector<128x128xbf16>
    %cst_15 = arith.constant dense<0.000000e+00> : vector<64x128xf32>
    %44 = tpu.matmul %42, %43, %cst_15 {dimension_numbers = #tpu.dot_dimension_numbers<[1], [0], [0], [1], [0, 0, 1, 1], [], []>} : vector<64x128xbf16>, vector<128x128xbf16>, vector<64x128xf32> -> vector<64x128xf32>
    %45 = vector.broadcast %4 : vector<1x128xf32> to vector<64x128xf32>
    %46 = arith.addf %44, %45 : vector<64x128xf32>
    %cst_16 = arith.constant dense<0.000000e+00> : vector<64xf32>
    %47 = vector.multi_reduction <add>, %46, %cst_16 [1] : vector<64x128xf32> to vector<64xf32>
    %48 = vector.shape_cast %47 : vector<64xf32> to vector<64x1xf32>
    %cst_17 = arith.constant 0.010416667 : f32
    %49 = vector.broadcast %cst_17 : f32 to vector<64x1xf32>
    %50 = arith.mulf %48, %49 : vector<64x1xf32>
    %51 = vector.broadcast %50 : vector<64x1xf32> to vector<64x128xf32>
    %52 = arith.subf %46, %51 : vector<64x128xf32>
    %53 = arith.mulf %52, %52 : vector<64x128xf32>
    %cst_18 = arith.constant dense<0.000000e+00> : vector<64xf32>
    %54 = vector.multi_reduction <add>, %53, %cst_18 [1] : vector<64x128xf32> to vector<64xf32>
    %55 = vector.shape_cast %54 : vector<64xf32> to vector<64x1xf32>
    %56 = arith.mulf %50, %50 : vector<64x1xf32>
    %cst_19 = arith.constant 3.200000e+01 : f32
    %57 = vector.broadcast %cst_19 : f32 to vector<64x1xf32>
    %58 = arith.mulf %57, %56 : vector<64x1xf32>
    %59 = arith.subf %55, %58 : vector<64x1xf32>
    %cst_20 = arith.constant 0.010416667 : f32
    %60 = vector.broadcast %cst_20 : f32 to vector<64x1xf32>
    %61 = arith.mulf %59, %60 : vector<64x1xf32>
    %cst_21 = arith.constant 1.000000e-03 : f32
    %62 = vector.broadcast %cst_21 : f32 to vector<64x1xf32>
    %63 = arith.addf %61, %62 : vector<64x1xf32>
    %64 = math.rsqrt %63 : vector<64x1xf32>
    %65 = vector.broadcast %64 : vector<64x1xf32> to vector<64x128xf32>
    %66 = arith.mulf %52, %65 : vector<64x128xf32>
    %67 = vector.broadcast %5 : vector<1x128xf32> to vector<64x128xf32>
    %68 = arith.mulf %66, %67 : vector<64x128xf32>
    %69 = vector.broadcast %6 : vector<1x128xf32> to vector<64x128xf32>
    %70 = arith.addf %68, %69 : vector<64x128xf32>
    %cst_22 = arith.constant 0.000000e+00 : f32
    %71 = vector.broadcast %cst_22 : f32 to vector<64x128xf32>
    %72 = arith.cmpf ogt, %70, %71 : vector<64x128xf32>
    %73 = math.exp %70 : vector<64x128xf32>
    %cst_23 = arith.constant 1.000000e+00 : f32
    %74 = vector.broadcast %cst_23 : f32 to vector<64x128xf32>
    %75 = arith.subf %73, %74 : vector<64x128xf32>
    %76 = arith.select %72, %70, %75 : vector<64x128xi1>, vector<64x128xf32>
    %77 = arith.truncf %76 : vector<64x128xf32> to vector<64x128xbf16>
    %c0_24 = arith.constant 0 : index
    %c0_25 = arith.constant 0 : index
    %78 = vector.load %arg4[%c0_24, %c0_25] : memref<128x1xbf16, #tpu.memory_space<vmem>>, vector<128x1xbf16>
    %cst_26 = arith.constant dense<0.000000e+00> : vector<64x1xf32>
    %79 = tpu.matmul %77, %78, %cst_26 {dimension_numbers = #tpu.dot_dimension_numbers<[1], [0], [0], [1], [0, 0, 1, 1], [], []>} : vector<64x128xbf16>, vector<128x1xbf16>, vector<64x1xf32> -> vector<64x1xf32>
    %c0_27 = arith.constant 0 : index
    %c0_28 = arith.constant 0 : index
    %80 = vector.load %arg6[%c0_27, %c0_28] : memref<1x1xf32, #tpu.memory_space<vmem>>, vector<1x1xf32>
    %81 = vector.broadcast %80 : vector<1x1xf32> to vector<64x1xf32>
    %82 = arith.addf %79, %81 : vector<64x1xf32>
    %c0_29 = arith.constant 0 : index
    %c0_30 = arith.constant 0 : index
    %83 = vector.load %arg7[%c0_29, %c0_30] : memref<64x1xf32, #tpu.memory_space<vmem>>, vector<64x1xf32>
    tpu.vector_store %arg7[%c0_29, %c0_30], %82 {strides = array<i32>} : memref<64x1xf32, #tpu.memory_space<vmem>>, vector<64x1xf32>,
    return
  }
  func.func @transform_0(%arg0: i32) -> (i32, i32) {
    %c0_i32 = arith.constant 0 : i32
    %c0_i32_0 = arith.constant 0 : i32
    return %arg0, %c0_i32 : i32, i32
  }
  func.func @transform_1(%arg0: i32) -> (i32, i32) {
    %c0_i32 = arith.constant 0 : i32
    %c0_i32_0 = arith.constant 0 : i32
    %c0_i32_1 = arith.constant 0 : i32
    return %c0_i32, %c0_i32_0 : i32, i32
  }
  func.func @transform_2(%arg0: i32) -> (i32, i32) {
    %c0_i32 = arith.constant 0 : i32
    %c0_i32_0 = arith.constant 0 : i32
    %c0_i32_1 = arith.constant 0 : i32
    return %c0_i32, %c0_i32_0 : i32, i32
  }
  func.func @transform_3(%arg0: i32) -> (i32, i32) {
    %c0_i32 = arith.constant 0 : i32
    %c0_i32_0 = arith.constant 0 : i32
    %c0_i32_1 = arith.constant 0 : i32
    return %c0_i32, %c0_i32_0 : i32, i32
  }
  func.func @transform_4(%arg0: i32) -> (i32, i32) {
    %c0_i32 = arith.constant 0 : i32
    %c0_i32_0 = arith.constant 0 : i32
    %c0_i32_1 = arith.constant 0 : i32
    return %c0_i32, %c0_i32_0 : i32, i32
  }
  func.func @transform_5(%arg0: i32) -> (i32, i32) {
    %c0_i32 = arith.constant 0 : i32
    %c0_i32_0 = arith.constant 0 : i32
    %c0_i32_1 = arith.constant 0 : i32
    return %c0_i32, %c0_i32_0 : i32, i32
  }
  func.func @transform_6(%arg0: i32) -> (i32, i32) {
    %c0_i32 = arith.constant 0 : i32
    %c0_i32_0 = arith.constant 0 : i32
    return %arg0, %c0_i32 : i32, i32
  }
}

</mosaic_0001>

<llo_original>
// kernel: multi_decoder_mlp_forward.1
$region0: #{multi_decoder_mlp_forward.1}
  #allocation0 [shape = 'u32[]', space=smem, size = 0x4, offset = 0x4, fixed_abs, tag = 'smem constant byte address 0x4 - core index']
  #allocation1 [shape = 'u32[144,128]{1,0:T(1,128)}', space=vmem, size = 0x12000, scoped, tag = 'internal scratch']
  #allocation2 [shape = 'f32[1,1]{1,0:T(1,128)S(1)}', space=vmem, size = 0x200, scoped, tag = 'scoped memory for multi_decoder_mlp_forward.1']
  %s0 = inlined_call_operand.vmem [shape: bf16[512,64], index: 0, kind: input, shape index: {}]
  %s1 = inlined_call_operand.vmem [shape: bf16[64,128], index: 1, kind: input, shape index: {}]
  %s2 = inlined_call_operand.vmem [shape: bf16[128,128], index: 2, kind: input, shape index: {}]
  %s3 = inlined_call_operand.vmem [shape: bf16[128,1], index: 3, kind: input, shape index: {}]
  %s4 = inlined_call_operand.vmem [shape: f32[6,128], index: 4, kind: input, shape index: {}]
  %s5 = inlined_call_operand.<no memory space> [shape: f32[1,1], index: 5, kind: input, shape index: {}]
  %s6 = inlined_call_operand.vmem [shape: f32[512,1], index: 6, kind: output, shape index: {}]
  %s7 = sld [smem:[#allocation0]]
  $region57: #{multi_decoder_mlp_forward.1} parent=0
    _
  %s9 = ssub.s32 1, %s7
  %s10 = scalar_select 0, %s9, %s7
  %v11 = vstv %s5
  %12 = vst [vmem:[#allocation2] sm:$0x1] %v11
  loop: start=0, step=1, limit=10
  $region2: #{multi_decoder_mlp_forward.1} parent=0 // loop_pre_header
    _
  $region3: #{multi_decoder_mlp_forward.1} parent=0 // loop_header
    %s14 = sphi 0, %s18
    %p15 = scmp.ge.s32.totalorder %s14, 10
    %s24 = sphi 0, %s26
    %s27 = sphi 0, %s24
    %s28 = sphi 0, %s27
    %s44 = sphi 0, %s28
    %s48 = sphi 0, %s48
    %s50 = sphi 0, %s48
    %s51 = sphi 0, %s50
    %s65 = sphi 0, %s51
    %s69 = sphi 0, %s69
    %s71 = sphi 0, %s69
    %s72 = sphi 0, %s71
    %s86 = sphi 0, %s72
    %s90 = sphi 0, %s90
    %s92 = sphi 0, %s90
    %s93 = sphi 0, %s92
    %s107 = sphi 0, %s93
    %s111 = sphi 0, %s111
    %s113 = sphi 0, %s111
    %s114 = sphi 0, %s113
    %s128 = sphi 0, %s114
    %s132 = sphi 0, %s132
    %s134 = sphi 0, %s132
    %s135 = sphi 0, %s134
    %s149 = sphi 0, %s135
    %s155 = sphi 0, %s157
    %s158 = sphi 0, %s155
    %s159 = sphi 0, %s158
    %s175 = sphi 0, %s159
  $region4: #{multi_decoder_mlp_forward.1} parent=0 // loop_header_branch
    %17 = sbr.rel (%p15) target = $region8
  $region5: #{multi_decoder_mlp_forward.1} parent=0 // loop_body
    %s19 = ssub.s32 %s14, 1
    %s20 = ssub.s32 %s14, 2
    %s21 = sadd.s32 %s14, 1
    %s22 = ssub.s32 %s14, %s21
    %p23 = scmp.eq.s32.totalorder %s22, 0
    %s25 = sadd.s32 %s24, 1
    %s26 = scalar_select %p23, %s24, %s25
    %p29 = pneg %p23
    %p30 = scmp.eq.s32.totalorder %s14, 7
    %p31 = por %p29, %p30
    %p32 = scmp.ne.s32.totalorder %s24, %s27
    %p33 = scmp.eq.s32.totalorder %s14, 0
    %p34 = por %p32, %p33
    %p35 = scmp.ne.s32.totalorder %s24, %s27
    %p36 = scmp.eq.s32.totalorder %s19, 7
    %p37 = por %p35, %p36
    %p38 = scmp.ne.s32.totalorder %s27, %s28
    %p39 = scmp.eq.s32.totalorder %s19, 0
    %p40 = por %p38, %p39
    %p41 = scmp.ne.s32.totalorder %s27, %s28
    %p42 = scmp.eq.s32.totalorder %s20, 7
    %p43 = por %p41, %p42
    %p45 = scmp.ne.s32.totalorder %s28, %s44
    %p46 = scmp.eq.s32.totalorder %s20, 0
    %p47 = por %p45, %p46
    %s49 = sadd.s32 %s48, 1
    %p52 = scmp.eq.s32.totalorder %s14, 7
    %p53 = scmp.ne.s32.totalorder %s48, %s50
    %p54 = scmp.eq.s32.totalorder %s14, 0
    %p55 = por %p53, %p54
    %p56 = scmp.ne.s32.totalorder %s48, %s50
    %p57 = scmp.eq.s32.totalorder %s19, 7
    %p58 = por %p56, %p57
    %p59 = scmp.ne.s32.totalorder %s50, %s51
    %p60 = scmp.eq.s32.totalorder %s19, 0
    %p61 = por %p59, %p60
    %p62 = scmp.ne.s32.totalorder %s50, %s51
    %p63 = scmp.eq.s32.totalorder %s20, 7
    %p64 = por %p62, %p63
    %p66 = scmp.ne.s32.totalorder %s51, %s65
    %p67 = scmp.eq.s32.totalorder %s20, 0
    %p68 = por %p66, %p67
    %s70 = sadd.s32 %s69, 1
    %p73 = scmp.eq.s32.totalorder %s14, 7
    %p74 = scmp.ne.s32.totalorder %s69, %s71
    %p75 = scmp.eq.s32.totalorder %s14, 0
    %p76 = por %p74, %p75
    %p77 = scmp.ne.s32.totalorder %s69, %s71
    %p78 = scmp.eq.s32.totalorder %s19, 7
    %p79 = por %p77, %p78
    %p80 = scmp.ne.s32.totalorder %s71, %s72
    %p81 = scmp.eq.s32.totalorder %s19, 0
    %p82 = por %p80, %p81
    %p83 = scmp.ne.s32.totalorder %s71, %s72
    %p84 = scmp.eq.s32.totalorder %s20, 7
    %p85 = por %p83, %p84
    %p87 = scmp.ne.s32.totalorder %s72, %s86
    %p88 = scmp.eq.s32.totalorder %s20, 0
    %p89 = por %p87, %p88
    %s91 = sadd.s32 %s90, 1
    %p94 = scmp.eq.s32.totalorder %s14, 7
    %p95 = scmp.ne.s32.totalorder %s90, %s92
    %p96 = scmp.eq.s32.totalorder %s14, 0
    %p97 = por %p95, %p96
    %p98 = scmp.ne.s32.totalorder %s90, %s92
    %p99 = scmp.eq.s32.totalorder %s19, 7
    %p100 = por %p98, %p99
    %p101 = scmp.ne.s32.totalorder %s92, %s93
    %p102 = scmp.eq.s32.totalorder %s19, 0
    %p103 = por %p101, %p102
    %p104 = scmp.ne.s32.totalorder %s92, %s93
    %p105 = scmp.eq.s32.totalorder %s20, 7
    %p106 = por %p104, %p105
    %p108 = scmp.ne.s32.totalorder %s93, %s107
    %p109 = scmp.eq.s32.totalorder %s20, 0
    %p110 = por %p108, %p109
    %s112 = sadd.s32 %s111, 1
    %p115 = scmp.eq.s32.totalorder %s14, 7
    %p116 = scmp.ne.s32.totalorder %s111, %s113
    %p117 = scmp.eq.s32.totalorder %s14, 0
    %p118 = por %p116, %p117
    %p119 = scmp.ne.s32.totalorder %s111, %s113
    %p120 = scmp.eq.s32.totalorder %s19, 7
    %p121 = por %p119, %p120
    %p122 = scmp.ne.s32.totalorder %s113, %s114
    %p123 = scmp.eq.s32.totalorder %s19, 0
    %p124 = por %p122, %p123
    %p125 = scmp.ne.s32.totalorder %s113, %s114
    %p126 = scmp.eq.s32.totalorder %s20, 7
    %p127 = por %p125, %p126
    %p129 = scmp.ne.s32.totalorder %s114, %s128
    %p130 = scmp.eq.s32.totalorder %s20, 0
    %p131 = por %p129, %p130
    %s133 = sadd.s32 %s132, 1
    %p136 = scmp.eq.s32.totalorder %s14, 7
    %p137 = scmp.ne.s32.totalorder %s132, %s134
    %p138 = scmp.eq.s32.totalorder %s14, 0
    %p139 = por %p137, %p138
    %p140 = scmp.ne.s32.totalorder %s132, %s134
    %p141 = scmp.eq.s32.totalorder %s19, 7
    %p142 = por %p140, %p141
    %p143 = scmp.ne.s32.totalorder %s134, %s135
    %p144 = scmp.eq.s32.totalorder %s19, 0
    %p145 = por %p143, %p144
    %p146 = scmp.ne.s32.totalorder %s134, %s135
    %p147 = scmp.eq.s32.totalorder %s20, 7
    %p148 = por %p146, %p147
    %p150 = scmp.ne.s32.totalorder %s135, %s149
    %p151 = scmp.eq.s32.totalorder %s20, 0
    %p152 = por %p150, %p151
    %s153 = ssub.s32 %s14, %s21
    %p154 = scmp.eq.s32.totalorder %s153, 0
    %s156 = sadd.s32 %s155, 1
    %s157 = scalar_select %p154, %s155, %s156
    %p160 = pneg %p154
    %p161 = scmp.eq.s32.totalorder %s14, 7
    %p162 = por %p160, %p161
    %p163 = scmp.ne.s32.totalorder %s155, %s158
    %p164 = scmp.eq.s32.totalorder %s14, 0
    %p165 = por %p163, %p164
    %p166 = scmp.ne.s32.totalorder %s155, %s158
    %p167 = scmp.eq.s32.totalorder %s19, 7
    %p168 = por %p166, %p167
    %p169 = scmp.ne.s32.totalorder %s158, %s159
    %p170 = scmp.eq.s32.totalorder %s19, 0
    %p171 = por %p169, %p170
    %p172 = scmp.ne.s32.totalorder %s158, %s159
    %p173 = scmp.eq.s32.totalorder %s20, 7
    %p174 = por %p172, %p173
    %p176 = scmp.ne.s32.totalorder %s159, %s175
    %p177 = scmp.eq.s32.totalorder %s20, 0
    %p178 = por %p176, %p177
    %p179 = scmp.le.s32.totalorder 1, %s14
    %p180 = scmp.lt.s32.totalorder %s14, 9
    %p181 = pnand %p179, %p180
    %p182 = pneg %p181
    // Predicated region
    $region9: #{multi_decoder_mlp_forward.1} parent=5 // pred_check
      _
    $region10: #{multi_decoder_mlp_forward.1} parent=5 // pred_check_branch
      %184 = sbr.rel (%p181) target = $region12
    $region11: #{multi_decoder_mlp_forward.1} parent=5 // pred_region
      %s185 = ssub.s32 %s14, 1
      // Predicated region
      $region13: #{multi_decoder_mlp_forward.1} parent=11 // pred_check
        %p186 = pneg %p61
      $region14: #{multi_decoder_mlp_forward.1} parent=11 // pred_check_branch
        %188 = sbr.rel (%p186) target = $region16
      $region15: #{multi_decoder_mlp_forward.1} parent=11 // pred_region
        _
      $region16: #{multi_decoder_mlp_forward.1} parent=11 // pred_fallthru
        _
      // Predicated region
      $region17: #{multi_decoder_mlp_forward.1} parent=11 // pred_check
        %p189 = pneg %p82
      $region18: #{multi_decoder_mlp_forward.1} parent=11 // pred_check_branch
        %191 = sbr.rel (%p189) target = $region20
      $region19: #{multi_decoder_mlp_forward.1} parent=11 // pred_region
        _
      $region20: #{multi_decoder_mlp_forward.1} parent=11 // pred_fallthru
        _
      // Predicated region
      $region21: #{multi_decoder_mlp_forward.1} parent=11 // pred_check
        %p192 = pneg %p103
      $region22: #{multi_decoder_mlp_forward.1} parent=11 // pred_check_branch
        %194 = sbr.rel (%p192) target = $region24
      $region23: #{multi_decoder_mlp_forward.1} parent=11 // pred_region
        _
      $region24: #{multi_decoder_mlp_forward.1} parent=11 // pred_fallthru
        _
      // Predicated region
      $region25: #{multi_decoder_mlp_forward.1} parent=11 // pred_check
        %p195 = pneg %p124
      $region26: #{multi_decoder_mlp_forward.1} parent=11 // pred_check_branch
        %197 = sbr.rel (%p195) target = $region28
      $region27: #{multi_decoder_mlp_forward.1} parent=11 // pred_region
        _
      $region28: #{multi_decoder_mlp_forward.1} parent=11 // pred_fallthru
        _
      // Predicated region
      $region29: #{multi_decoder_mlp_forward.1} parent=11 // pred_check
        %p198 = pneg %p145
      $region30: #{multi_decoder_mlp_forward.1} parent=11 // pred_check_branch
        %200 = sbr.rel (%p198) target = $region32
      $region31: #{multi_decoder_mlp_forward.1} parent=11 // pred_region
        _
      $region32: #{multi_decoder_mlp_forward.1} parent=11 // pred_fallthru
        _
    $region12: #{multi_decoder_mlp_forward.1} parent=5 // pred_fallthru
      _
    %p201 = scmp.lt.s32.totalorder %s14, 8
    // Predicated region
    $region33: #{multi_decoder_mlp_forward.1} parent=5 // pred_check
      %p202 = pneg %p201
    $region34: #{multi_decoder_mlp_forward.1} parent=5 // pred_check_branch
      %204 = sbr.rel (%p202) target = $region36
    $region35: #{multi_decoder_mlp_forward.1} parent=5 // pred_region
      // Predicated region
      $region37: #{multi_decoder_mlp_forward.1} parent=35 // pred_check
        %p205 = pneg %p34
      $region38: #{multi_decoder_mlp_forward.1} parent=35 // pred_check_branch
        %207 = sbr.rel (%p205) target = $region40
      $region39: #{multi_decoder_mlp_forward.1} parent=35 // pred_region
        %s208 = smul.u32 8, %s14
        %p209 = scmp.lt.s32.totalorder %s208, 63
        %s210 = scalar_select %p209, %s208, 63
        %s211 = smul.addr %s210, 4
        %s212 = scalar_lea.vmem %s0, %s211
        %s213 = smul.u32 8, %s14
      $region40: #{multi_decoder_mlp_forward.1} parent=35 // pred_fallthru
        _
    $region36: #{multi_decoder_mlp_forward.1} parent=5 // pred_fallthru
      _
    %p214 = scmp.le.s32.totalorder 1, %s14
    %p215 = scmp.lt.s32.totalorder %s14, 9
    %p216 = pnand %p214, %p215
    %p217 = pneg %p216
    // Predicated region
    $region41: #{multi_decoder_mlp_forward.1} parent=5 // pred_check
      _
    $region42: #{multi_decoder_mlp_forward.1} parent=5 // pred_check_branch
      %219 = sbr.rel (%p216) target = $region44
    $region43: #{multi_decoder_mlp_forward.1} parent=5 // pred_region
      %s220 = ssub.s32 %s14, 1
      %s221 = smul.u32 8, %s19
      %p222 = scmp.lt.s32.totalorder %s221, 63
      %s223 = scalar_select %p222, %s221, 63
      %s224 = smul.addr %s223, 4
      %s225 = scalar_lea.vmem %s0, %s224
      %p226 = pneg %p40
      %p227 = pneg %p37
      %p228 = pneg %p61
      %p229 = pneg %p58
      %p230 = pneg %p82
      %p231 = pneg %p79
      %p232 = pneg %p103
      %p233 = pneg %p100
      %p234 = pneg %p124
      %p235 = pneg %p121
      %p236 = pneg %p145
      %p237 = pneg %p142
      %p238 = pneg %p171
      %p239 = pneg %p168
      %s240 = smul.u32 8, %s19
      %p241 = scmp.lt.s32.totalorder %s240, 63
      %s242 = scalar_select %p241, %s240, 63
      %s243 = smul.addr %s242, 8
      %s244 = scalar_lea.vmem %s6, %s243
      %s245 = smul.u32 8, %s19
      %p246 = scmp.lt.s32.totalorder %s245, 63
      %s247 = scalar_select %p246, %s245, 63
      %s248 = smul.addr %s247, 4
      %s249 = scalar_lea.vmem %s0, %s248
      %s250 = smul.u32 8, %s19
      %s251 = smul.u32 8, %s19
      %p252 = scmp.lt.s32.totalorder %s251, 63
      %s253 = scalar_select %p252, %s251, 63
      %s254 = smul.addr %s253, 8
      %s255 = scalar_lea.vmem %s6, %s254
      %s256 = smul.u32 8, %s19
      %v258 = vld [vmem:[%s4] sm:$0x3f]
      %v259 = vld [vmem:[%s249] sm:$0xf]
      %v260 = vld [vmem:[%s249 + $0x4] sm:$0xf]
      %v261 = vld [vmem:[%s249 + $0x8] sm:$0xf]
      %v262 = vld [vmem:[%s249 + $0xc] sm:$0xf]
      %v263 = vld [vmem:[%s249 + $0x10] sm:$0xf]
      %v264 = vld [vmem:[%s249 + $0x14] sm:$0xf]
      %v265 = vld [vmem:[%s249 + $0x18] sm:$0xf]
      %v266 = vld [vmem:[%s249 + $0x1c] sm:$0xf]
      %v267 = vld [vmem:[%s1] sm:$0xf]
      %v268 = vld [vmem:[%s1 + $0x4] sm:$0xf]
      %v269 = vld [vmem:[%s1 + $0x8] sm:$0xf]
      %v270 = vld [vmem:[%s1 + $0xc] sm:$0xf]
      %v271 = vld [vmem:[%s1 + $0x10] sm:$0xf]
      %v272 = vld [vmem:[%s1 + $0x14] sm:$0xf]
      %v273 = vld [vmem:[%s1 + $0x18] sm:$0xf]
      %v274 = vld [vmem:[%s1 + $0x1c] sm:$0xf]
      %v275 = vlaneseq
      %v276 = vshrl.u32 %v275, 7
      %v277 = vsub.s32 0, %v276
      %v278 = vrot.slane %v258, %v277
      %v287 = vunpack.c.l.b16 %v259
      %v288 = vunpack.c.l.b16 %v260
      %v289 = vunpack.c.l.b16 %v261
      %v290 = vunpack.c.l.b16 %v262
      %v291 = vunpack.c.l.b16 %v263
      %v292 = vunpack.c.l.b16 %v264
      %v293 = vunpack.c.l.b16 %v265
      %v294 = vunpack.c.l.b16 %v266
      %v295 = vpack.c.b16 %v288, %v287
      %v296 = vpack.c.b16 %v290, %v289
      %v297 = vpack.c.b16 %v292, %v291
      %v298 = vpack.c.b16 %v294, %v293
      %v307 = vunpack.c.l.b16 %v267
      %v308 = vunpack.c.l.b16 %v268
      %v309 = vunpack.c.l.b16 %v269
      %v310 = vunpack.c.l.b16 %v270
      %v311 = vunpack.c.l.b16 %v271
      %v312 = vunpack.c.l.b16 %v272
      %v313 = vunpack.c.l.b16 %v273
      %v314 = vunpack.c.l.b16 %v274
      %v315 = vpack.c.b16 %v308, %v307
      %v316 = vpack.c.b16 %v310, %v309
      %v317 = vpack.c.b16 %v312, %v311
      %v318 = vpack.c.b16 %v314, %v313
      %vm323 = vcmask 523264
      %v325 = vsel %vm323, %v295, 0
      %v328 = vsel %vm323, %v296, 0
      %v331 = vsel %vm323, %v297, 0
      %v334 = vsel %vm323, %v298, 0
      %336 = vmatprep.subr.bf16.mxu0 0
      %337 = vmatpush1.bf16.msra.mxu0 %v315
      %338 = vmatprep.subr.bf16.mxu0 0
      %339 = vmatpush1.bf16.msra.mxu0 %v316
      %340 = vmatprep.subr.bf16.mxu0 0
      %341 = vmatpush1.bf16.msra.mxu0 %v317
      %342 = vmatprep.subr.bf16.mxu0 0
      %343 = vmatpush1.bf16.msra.mxu0 %v318
      %344 = vmatprep.subr.bf16.mxu0 0
      %345 = vmatpush1.bf16.msra.mxu0 0
      %346 = vmatprep.subr.bf16.mxu0 0
      %347 = vmatpush1.bf16.msra.mxu0 0
      %348 = vmatprep.subr.bf16.mxu0 0
      %349 = vmatpush1.bf16.msra.mxu0 0
      %350 = vmatprep.subr.bf16.mxu0 0
      %351 = vmatpush1.bf16.msra.mxu0 0
      %352 = vmatprep.subr.bf16.mxu0 0
      %353 = vmatpush1.bf16.msra.mxu0 0
      %354 = vmatprep.subr.bf16.mxu0 0
      %355 = vmatpush1.bf16.msra.mxu0 0
      %356 = vmatprep.subr.bf16.mxu0 0
      %357 = vmatpush1.bf16.msra.mxu0 0
      %358 = vmatprep.subr.bf16.mxu0 0
      %359 = vmatpush1.bf16.msra.mxu0 0
      %360 = vmatprep.subr.bf16.mxu0 0
      %361 = vmatpush1.bf16.msra.mxu0 0
      %362 = vmatprep.subr.bf16.mxu0 0
      %363 = vmatpush1.bf16.msra.mxu0 0
      %364 = vmatprep.subr.bf16.mxu0 0
      %365 = vmatpush1.bf16.msra.mxu0 0
      %366 = vmatprep.subr.bf16.mxu0 0
      %367 = vmatpush1.bf16.msra.mxu0 0
      %368 = vmatprep.mubr.bf16.mxu0 0
      %369 = vmatmul.mubr.bf16.gmra.mrb[0].mxu0 %v325
      %v370 = vpop.f32.mrb[0].mxu0
      %v371 = vadd.f32 %v278, %v370
      %v372 = vpop.f32.mrb[0].mxu0
      %v373 = vpop.f32.mrb[0].mxu0
      %v374 = vadd.f32 %v278, %v373
      %v375 = vpop.f32.mrb[0].mxu0
      %376 = vmatprep.mubr.bf16.mxu0 0
      %377 = vmatmul.mubr.bf16.gmra.mrb[0].mxu0 %v328
      %v378 = vpop.f32.mrb[0].mxu0
      %v379 = vadd.f32 %v278, %v378
      %v380 = vpop.f32.mrb[0].mxu0
      %v381 = vpop.f32.mrb[0].mxu0
      %v382 = vadd.f32 %v278, %v381
      %v383 = vpop.f32.mrb[0].mxu0
      %384 = vmatprep.mubr.bf16.mxu0 0
      %385 = vmatmul.mubr.bf16.gmra.mrb[0].mxu0 %v331
      %v386 = vpop.f32.mrb[0].mxu0
      %v387 = vadd.f32 %v278, %v386
      %v388 = vpop.f32.mrb[0].mxu0
      %v389 = vpop.f32.mrb[0].mxu0
      %v390 = vadd.f32 %v278, %v389
      %v391 = vpop.f32.mrb[0].mxu0
      %392 = vmatprep.mubr.bf16.mxu0 0
      %393 = vmatmul.mubr.bf16.gmra.mrb[0].mxu0 %v334
      %v394 = vpop.f32.mrb[0].mxu0
      %v395 = vadd.f32 %v278, %v394
      %v396 = vpop.f32.mrb[0].mxu0
      %v397 = vpop.f32.mrb[0].mxu0
      %v398 = vadd.f32 %v278, %v397
      %v399 = vpop.f32.mrb[0].mxu0
      %400 = vdwg.mxu0
      %401 = vadd.xlane.f32.xlu0 %v371
      %v402 = vpop.xlane.xlu0 %401
      %403 = vadd.xlane.f32.xlu0 %v374
      %v404 = vpop.xlane.xlu0 %403
      %405 = vadd.xlane.f32.xlu0 %v379
      %v406 = vpop.xlane.xlu0 %405
      %407 = vadd.xlane.f32.xlu0 %v382
      %v408 = vpop.xlane.xlu0 %407
      %409 = vadd.xlane.f32.xlu0 %v387
      %v410 = vpop.xlane.xlu0 %409
      %411 = vadd.xlane.f32.xlu0 %v390
      %v412 = vpop.xlane.xlu0 %411
      %413 = vadd.xlane.f32.xlu0 %v395
      %v414 = vpop.xlane.xlu0 %413
      %415 = vadd.xlane.f32.xlu0 %v398
      %v416 = vpop.xlane.xlu0 %415
      %v417 = vmul.f32 %v402, 0.010416667
      %v418 = vmul.f32 %v404, 0.010416667
      %v419 = vmul.f32 %v406, 0.010416667
      %v420 = vmul.f32 %v408, 0.010416667
      %v421 = vmul.f32 %v410, 0.010416667
      %v422 = vmul.f32 %v412, 0.010416667
      %v423 = vmul.f32 %v414, 0.010416667
      %v424 = vmul.f32 %v416, 0.010416667
      %v425 = vsub.f32 %v371, %v417
      %v426 = vsub.f32 %v374, %v418
      %v427 = vsub.f32 %v379, %v419
      %v428 = vsub.f32 %v382, %v420
      %v429 = vsub.f32 %v387, %v421
      %v430 = vsub.f32 %v390, %v422
      %v431 = vsub.f32 %v395, %v423
      %v432 = vsub.f32 %v398, %v424
      %v433 = vmul.f32 %v425, %v425
      %v434 = vmul.f32 %v426, %v426
      %v435 = vmul.f32 %v427, %v427
      %v436 = vmul.f32 %v428, %v428
      %v437 = vmul.f32 %v429, %v429
      %v438 = vmul.f32 %v430, %v430
      %v439 = vmul.f32 %v431, %v431
      %v440 = vmul.f32 %v432, %v432
      %441 = vadd.xlane.f32.xlu0 %v433
      %v442 = vpop.xlane.xlu0 %441
      %443 = vadd.xlane.f32.xlu0 %v434
      %v444 = vpop.xlane.xlu0 %443
      %445 = vadd.xlane.f32.xlu0 %v435
      %v446 = vpop.xlane.xlu0 %445
      %447 = vadd.xlane.f32.xlu0 %v436
      %v448 = vpop.xlane.xlu0 %447
      %449 = vadd.xlane.f32.xlu0 %v437
      %v450 = vpop.xlane.xlu0 %449
      %451 = vadd.xlane.f32.xlu0 %v438
      %v452 = vpop.xlane.xlu0 %451
      %453 = vadd.xlane.f32.xlu0 %v439
      %v454 = vpop.xlane.xlu0 %453
      %455 = vadd.xlane.f32.xlu0 %v440
      %v456 = vpop.xlane.xlu0 %455
      %v457 = vmul.f32 %v417, %v417
      %v458 = vmul.f32 %v418, %v418
      %v459 = vmul.f32 %v419, %v419
      %v460 = vmul.f32 %v420, %v420
      %v461 = vmul.f32 %v421, %v421
      %v462 = vmul.f32 %v422, %v422
      %v463 = vmul.f32 %v423, %v423
      %v464 = vmul.f32 %v424, %v424
      %v465 = vmul.f32 %v457, 32.0
      %v466 = vmul.f32 %v458, 32.0
      %v467 = vmul.f32 %v459, 32.0
      %v468 = vmul.f32 %v460, 32.0
      %v469 = vmul.f32 %v461, 32.0
      %v470 = vmul.f32 %v462, 32.0
      %v471 = vmul.f32 %v463, 32.0
      %v472 = vmul.f32 %v464, 32.0
      %v473 = vsub.f32 %v442, %v465
      %v474 = vsub.f32 %v444, %v466
      %v475 = vsub.f32 %v446, %v467
      %v476 = vsub.f32 %v448, %v468
      %v477 = vsub.f32 %v450, %v469
      %v478 = vsub.f32 %v452, %v470
      %v479 = vsub.f32 %v454, %v471
      %v480 = vsub.f32 %v456, %v472
      %v481 = vmul.f32 %v473, 0.010416667
      %v482 = vmul.f32 %v474, 0.010416667
      %v483 = vmul.f32 %v475, 0.010416667
      %v484 = vmul.f32 %v476, 0.010416667
      %v485 = vmul.f32 %v477, 0.010416667
      %v486 = vmul.f32 %v478, 0.010416667
      %v487 = vmul.f32 %v479, 0.010416667
      %v488 = vmul.f32 %v480, 0.010416667
      %v489 = vadd.f32 %v481, 0.001
      %v490 = vadd.f32 %v482, 0.001
      %v491 = vadd.f32 %v483, 0.001
      %v492 = vadd.f32 %v484, 0.001
      %v493 = vadd.f32 %v485, 0.001
      %v494 = vadd.f32 %v486, 0.001
      %v495 = vadd.f32 %v487, 0.001
      %v496 = vadd.f32 %v488, 0.001
      %v497 = vrsqrt.pop %v489
      %v498 = vrsqrt.pop %v490
      %v499 = vrsqrt.pop %v491
      %v500 = vrsqrt.pop %v492
      %v501 = vrsqrt.pop %v493
      %v502 = vrsqrt.pop %v494
      %v503 = vrsqrt.pop %v495
      %v504 = vrsqrt.pop %v496
      %v505 = vmul.f32 %v425, %v497
      %v506 = vmul.f32 %v426, %v498
      %v507 = vmul.f32 %v427, %v499
      %v508 = vmul.f32 %v428, %v500
      %v509 = vmul.f32 %v429, %v501
      %v510 = vmul.f32 %v430, %v502
      %v511 = vmul.f32 %v431, %v503
      %v512 = vmul.f32 %v432, %v504
      %v513 = vlaneseq
      %v514 = vshrl.u32 %v513, 7
      %v515 = vsub.s32 1, %v514
      %v516 = vrot.slane %v258, %v515
      %v517 = vmul.f32 %v505, %v516
      %v518 = vmul.f32 %v506, %v516
      %v519 = vmul.f32 %v507, %v516
      %v520 = vmul.f32 %v508, %v516
      %v521 = vmul.f32 %v509, %v516
      %v522 = vmul.f32 %v510, %v516
      %v523 = vmul.f32 %v511, %v516
      %v524 = vmul.f32 %v512, %v516
      %v525 = vlaneseq
      %v526 = vshrl.u32 %v525, 7
      %v527 = vsub.s32 2, %v526
      %v528 = vrot.slane %v258, %v527
      %v529 = vadd.f32 %v517, %v528
      %v530 = vadd.f32 %v518, %v528
      %v531 = vadd.f32 %v519, %v528
      %v532 = vadd.f32 %v520, %v528
      %v533 = vadd.f32 %v521, %v528
      %v534 = vadd.f32 %v522, %v528
      %v535 = vadd.f32 %v523, %v528
      %v536 = vadd.f32 %v524, %v528
      %vm537 = vcmp.gt.f32.partialorder %v529, 0.0
      %vm538 = vcmp.gt.f32.partialorder %v530, 0.0
      %vm539 = vcmp.gt.f32.partialorder %v531, 0.0
      %vm540 = vcmp.gt.f32.partialorder %v532, 0.0
      %vm541 = vcmp.gt.f32.partialorder %v533, 0.0
      %vm542 = vcmp.gt.f32.partialorder %v534, 0.0
      %vm543 = vcmp.gt.f32.partialorder %v535, 0.0
      %vm544 = vcmp.gt.f32.partialorder %v536, 0.0
      %v545 = vmul.f32 %v529, 1.442695
      %v546 = vpow.pop %v545
      %v547 = vmul.f32 %v530, 1.442695
      %v548 = vpow.pop %v547
      %v549 = vmul.f32 %v531, 1.442695
      %v550 = vpow.pop %v549
      %v551 = vmul.f32 %v532, 1.442695
      %v552 = vpow.pop %v551
      %v553 = vmul.f32 %v533, 1.442695
      %v554 = vpow.pop %v553
      %v555 = vmul.f32 %v534, 1.442695
      %v556 = vpow.pop %v555
      %v557 = vmul.f32 %v535, 1.442695
      %v558 = vpow.pop %v557
      %v559 = vmul.f32 %v536, 1.442695
      %v560 = vpow.pop %v559
      %v561 = vsub.f32 %v546, 1.0
      %v562 = vsub.f32 %v548, 1.0
      %v563 = vsub.f32 %v550, 1.0
      %v564 = vsub.f32 %v552, 1.0
      %v565 = vsub.f32 %v554, 1.0
      %v566 = vsub.f32 %v556, 1.0
      %v567 = vsub.f32 %v558, 1.0
      %v568 = vsub.f32 %v560, 1.0
      %v569 = vsel %vm537, %v529, %v561
      %v570 = vsel %vm538, %v530, %v562
      %v571 = vsel %vm539, %v531, %v563
      %v572 = vsel %vm540, %v532, %v564
      %v573 = vsel %vm541, %v533, %v565
      %v574 = vsel %vm542, %v534, %v566
      %v575 = vsel %vm543, %v535, %v567
      %v576 = vsel %vm544, %v536, %v568
      %v577 = vpack.c.bf16 %v570, %v569
      %v578 = vpack.c.bf16 %v572, %v571
      %v579 = vpack.c.bf16 %v574, %v573
      %v580 = vpack.c.bf16 %v576, %v575
      %v581 = vld [vmem:[%s2] sm:$0xf]
      %v582 = vld [vmem:[%s2 + $0x4] sm:$0xf]
      %v583 = vld [vmem:[%s2 + $0x8] sm:$0xf]
      %v584 = vld [vmem:[%s2 + $0xc] sm:$0xf]
      %v585 = vld [vmem:[%s2 + $0x10] sm:$0xf]
      %v586 = vld [vmem:[%s2 + $0x14] sm:$0xf]
      %v587 = vld [vmem:[%s2 + $0x18] sm:$0xf]
      %v588 = vld [vmem:[%s2 + $0x1c] sm:$0xf]
      %v589 = vld [vmem:[%s2 + $0x20] sm:$0xf]
      %v590 = vld [vmem:[%s2 + $0x24] sm:$0xf]
      %v591 = vld [vmem:[%s2 + $0x28] sm:$0xf]
      %v592 = vld [vmem:[%s2 + $0x2c] sm:$0xf]
      %v593 = vld [vmem:[%s2 + $0x30] sm:$0xf]
      %v594 = vld [vmem:[%s2 + $0x34] sm:$0xf]
      %v595 = vld [vmem:[%s2 + $0x38] sm:$0xf]
      %v596 = vld [vmem:[%s2 + $0x3c] sm:$0xf]
      %v597 = vlaneseq
      %v598 = vshrl.u32 %v597, 7
      %v599 = vsub.s32 3, %v598
      %v600 = vrot.slane %v258, %v599
      %v617 = vunpack.c.l.b16 %v581
      %v618 = vunpack.c.l.b16 %v582
      %v619 = vunpack.c.l.b16 %v583
      %v620 = vunpack.c.l.b16 %v584
      %v621 = vunpack.c.l.b16 %v585
      %v622 = vunpack.c.l.b16 %v586
      %v623 = vunpack.c.l.b16 %v587
      %v624 = vunpack.c.l.b16 %v588
      %v625 = vunpack.c.l.b16 %v589
      %v626 = vunpack.c.l.b16 %v590
      %v627 = vunpack.c.l.b16 %v591
      %v628 = vunpack.c.l.b16 %v592
      %v629 = vunpack.c.l.b16 %v593
      %v630 = vunpack.c.l.b16 %v594
      %v631 = vunpack.c.l.b16 %v595
      %v632 = vunpack.c.l.b16 %v596
      %v633 = vpack.c.b16 %v618, %v617
      %v634 = vpack.c.b16 %v620, %v619
      %v635 = vpack.c.b16 %v622, %v621
      %v636 = vpack.c.b16 %v624, %v623
      %v637 = vpack.c.b16 %v626, %v625
      %v638 = vpack.c.b16 %v628, %v627
      %v639 = vpack.c.b16 %v630, %v629
      %v640 = vpack.c.b16 %v632, %v631
      %649 = vmatprep.subr.bf16.mxu0 0
      %650 = vmatpush1.bf16.msra.mxu0 %v633
      %651 = vmatprep.subr.bf16.mxu0 0
      %652 = vmatpush1.bf16.msra.mxu0 %v634
      %653 = vmatprep.subr.bf16.mxu0 0
      %654 = vmatpush1.bf16.msra.mxu0 %v635
      %655 = vmatprep.subr.bf16.mxu0 0
      %656 = vmatpush1.bf16.msra.mxu0 %v636
      %657 = vmatprep.subr.bf16.mxu0 0
      %658 = vmatpush1.bf16.msra.mxu0 %v637
      %659 = vmatprep.subr.bf16.mxu0 0
      %660 = vmatpush1.bf16.msra.mxu0 %v638
      %661 = vmatprep.subr.bf16.mxu0 0
      %662 = vmatpush1.bf16.msra.mxu0 %v639
      %663 = vmatprep.subr.bf16.mxu0 0
      %664 = vmatpush1.bf16.msra.mxu0 %v640
      %665 = vmatprep.subr.bf16.mxu0 0
      %666 = vmatpush1.bf16.msra.mxu0 0
      %667 = vmatprep.subr.bf16.mxu0 0
      %668 = vmatpush1.bf16.msra.mxu0 0
      %669 = vmatprep.subr.bf16.mxu0 0
      %670 = vmatpush1.bf16.msra.mxu0 0
      %671 = vmatprep.subr.bf16.mxu0 0
      %672 = vmatpush1.bf16.msra.mxu0 0
      %673 = vmatprep.subr.bf16.mxu0 0
      %674 = vmatpush1.bf16.msra.mxu0 0
      %675 = vmatprep.subr.bf16.mxu0 0
      %676 = vmatpush1.bf16.msra.mxu0 0
      %677 = vmatprep.subr.bf16.mxu0 0
      %678 = vmatpush1.bf16.msra.mxu0 0
      %679 = vmatprep.subr.bf16.mxu0 0
      %680 = vmatpush1.bf16.msra.mxu0 0
      %681 = vmatprep.mubr.bf16.mxu0 0
      %682 = vmatmul.mubr.bf16.gmra.mrb[0].mxu0 %v577
      %v683 = vpop.f32.mrb[0].mxu0
      %v684 = vadd.f32 %v600, %v683
      %v685 = vpop.f32.mrb[0].mxu0
      %v686 = vpop.f32.mrb[0].mxu0
      %v687 = vadd.f32 %v600, %v686
      %v688 = vpop.f32.mrb[0].mxu0
      %689 = vmatprep.mubr.bf16.mxu0 0
      %690 = vmatmul.mubr.bf16.gmra.mrb[0].mxu0 %v578
      %v691 = vpop.f32.mrb[0].mxu0
      %v692 = vadd.f32 %v600, %v691
      %v693 = vpop.f32.mrb[0].mxu0
      %v694 = vpop.f32.mrb[0].mxu0
      %v695 = vadd.f32 %v600, %v694
      %v696 = vpop.f32.mrb[0].mxu0
      %697 = vmatprep.mubr.bf16.mxu0 0
      %698 = vmatmul.mubr.bf16.gmra.mrb[0].mxu0 %v579
      %v699 = vpop.f32.mrb[0].mxu0
      %v700 = vadd.f32 %v600, %v699
      %v701 = vpop.f32.mrb[0].mxu0
      %v702 = vpop.f32.mrb[0].mxu0
      %v703 = vadd.f32 %v600, %v702
      %v704 = vpop.f32.mrb[0].mxu0
      %705 = vmatprep.mubr.bf16.mxu0 0
      %706 = vmatmul.mubr.bf16.gmra.mrb[0].mxu0 %v580
      %v707 = vpop.f32.mrb[0].mxu0
      %v708 = vadd.f32 %v600, %v707
      %v709 = vpop.f32.mrb[0].mxu0
      %v710 = vpop.f32.mrb[0].mxu0
      %v711 = vadd.f32 %v600, %v710
      %v712 = vpop.f32.mrb[0].mxu0
      %713 = vdwg.mxu0
      %714 = vadd.xlane.f32.xlu0 %v684
      %v715 = vpop.xlane.xlu0 %714
      %716 = vadd.xlane.f32.xlu0 %v687
      %v717 = vpop.xlane.xlu0 %716
      %718 = vadd.xlane.f32.xlu0 %v692
      %v719 = vpop.xlane.xlu0 %718
      %720 = vadd.xlane.f32.xlu0 %v695
      %v721 = vpop.xlane.xlu0 %720
      %722 = vadd.xlane.f32.xlu0 %v700
      %v723 = vpop.xlane.xlu0 %722
      %724 = vadd.xlane.f32.xlu0 %v703
      %v725 = vpop.xlane.xlu0 %724
      %726 = vadd.xlane.f32.xlu0 %v708
      %v727 = vpop.xlane.xlu0 %726
      %728 = vadd.xlane.f32.xlu0 %v711
      %v729 = vpop.xlane.xlu0 %728
      %v730 = vmul.f32 %v715, 0.010416667
      %v731 = vmul.f32 %v717, 0.010416667
      %v732 = vmul.f32 %v719, 0.010416667
      %v733 = vmul.f32 %v721, 0.010416667
      %v734 = vmul.f32 %v723, 0.010416667
      %v735 = vmul.f32 %v725, 0.010416667
      %v736 = vmul.f32 %v727, 0.010416667
      %v737 = vmul.f32 %v729, 0.010416667
      %v738 = vsub.f32 %v684, %v730
      %v739 = vsub.f32 %v687, %v731
      %v740 = vsub.f32 %v692, %v732
      %v741 = vsub.f32 %v695, %v733
      %v742 = vsub.f32 %v700, %v734
      %v743 = vsub.f32 %v703, %v735
      %v744 = vsub.f32 %v708, %v736
      %v745 = vsub.f32 %v711, %v737
      %v746 = vmul.f32 %v738, %v738
      %v747 = vmul.f32 %v739, %v739
      %v748 = vmul.f32 %v740, %v740
      %v749 = vmul.f32 %v741, %v741
      %v750 = vmul.f32 %v742, %v742
      %v751 = vmul.f32 %v743, %v743
      %v752 = vmul.f32 %v744, %v744
      %v753 = vmul.f32 %v745, %v745
      %754 = vadd.xlane.f32.xlu0 %v746
      %v755 = vpop.xlane.xlu0 %754
      %756 = vadd.xlane.f32.xlu0 %v747
      %v757 = vpop.xlane.xlu0 %756
      %758 = vadd.xlane.f32.xlu0 %v748
      %v759 = vpop.xlane.xlu0 %758
      %760 = vadd.xlane.f32.xlu0 %v749
      %v761 = vpop.xlane.xlu0 %760
      %762 = vadd.xlane.f32.xlu0 %v750
      %v763 = vpop.xlane.xlu0 %762
      %764 = vadd.xlane.f32.xlu0 %v751
      %v765 = vpop.xlane.xlu0 %764
      %766 = vadd.xlane.f32.xlu0 %v752
      %v767 = vpop.xlane.xlu0 %766
      %768 = vadd.xlane.f32.xlu0 %v753
      %v769 = vpop.xlane.xlu0 %768
      %v770 = vmul.f32 %v730, %v730
      %v771 = vmul.f32 %v731, %v731
      %v772 = vmul.f32 %v732, %v732
      %v773 = vmul.f32 %v733, %v733
      %v774 = vmul.f32 %v734, %v734
      %v775 = vmul.f32 %v735, %v735
      %v776 = vmul.f32 %v736, %v736
      %v777 = vmul.f32 %v737, %v737
      %v778 = vmul.f32 %v770, 32.0
      %v779 = vmul.f32 %v771, 32.0
      %v780 = vmul.f32 %v772, 32.0
      %v781 = vmul.f32 %v773, 32.0
      %v782 = vmul.f32 %v774, 32.0
      %v783 = vmul.f32 %v775, 32.0
      %v784 = vmul.f32 %v776, 32.0
      %v785 = vmul.f32 %v777, 32.0
      %v786 = vsub.f32 %v755, %v778
      %v787 = vsub.f32 %v757, %v779
      %v788 = vsub.f32 %v759, %v780
      %v789 = vsub.f32 %v761, %v781
      %v790 = vsub.f32 %v763, %v782
      %v791 = vsub.f32 %v765, %v783
      %v792 = vsub.f32 %v767, %v784
      %v793 = vsub.f32 %v769, %v785
      %v794 = vmul.f32 %v786, 0.010416667
      %v795 = vmul.f32 %v787, 0.010416667
      %v796 = vmul.f32 %v788, 0.010416667
      %v797 = vmul.f32 %v789, 0.010416667
      %v798 = vmul.f32 %v790, 0.010416667
      %v799 = vmul.f32 %v791, 0.010416667
      %v800 = vmul.f32 %v792, 0.010416667
      %v801 = vmul.f32 %v793, 0.010416667
      %v802 = vadd.f32 %v794, 0.001
      %v803 = vadd.f32 %v795, 0.001
      %v804 = vadd.f32 %v796, 0.001
      %v805 = vadd.f32 %v797, 0.001
      %v806 = vadd.f32 %v798, 0.001
      %v807 = vadd.f32 %v799, 0.001
      %v808 = vadd.f32 %v800, 0.001
      %v809 = vadd.f32 %v801, 0.001
      %v810 = vrsqrt.pop %v802
      %v811 = vrsqrt.pop %v803
      %v812 = vrsqrt.pop %v804
      %v813 = vrsqrt.pop %v805
      %v814 = vrsqrt.pop %v806
      %v815 = vrsqrt.pop %v807
      %v816 = vrsqrt.pop %v808
      %v817 = vrsqrt.pop %v809
      %v818 = vmul.f32 %v738, %v810
      %v819 = vmul.f32 %v739, %v811
      %v820 = vmul.f32 %v740, %v812
      %v821 = vmul.f32 %v741, %v813
      %v822 = vmul.f32 %v742, %v814
      %v823 = vmul.f32 %v743, %v815
      %v824 = vmul.f32 %v744, %v816
      %v825 = vmul.f32 %v745, %v817
      %v826 = vlaneseq
      %v827 = vshrl.u32 %v826, 7
      %v828 = vsub.s32 4, %v827
      %v829 = vrot.slane %v258, %v828
      %v830 = vmul.f32 %v818, %v829
      %v831 = vmul.f32 %v819, %v829
      %v832 = vmul.f32 %v820, %v829
      %v833 = vmul.f32 %v821, %v829
      %v834 = vmul.f32 %v822, %v829
      %v835 = vmul.f32 %v823, %v829
      %v836 = vmul.f32 %v824, %v829
      %v837 = vmul.f32 %v825, %v829
      %v838 = vlaneseq
      %v839 = vshrl.u32 %v838, 7
      %v840 = vsub.s32 5, %v839
      %v841 = vrot.slane %v258, %v840
      %v842 = vadd.f32 %v830, %v841
      %v843 = vadd.f32 %v831, %v841
      %v844 = vadd.f32 %v832, %v841
      %v845 = vadd.f32 %v833, %v841
      %v846 = vadd.f32 %v834, %v841
      %v847 = vadd.f32 %v835, %v841
      %v848 = vadd.f32 %v836, %v841
      %v849 = vadd.f32 %v837, %v841
      %vm850 = vcmp.gt.f32.partialorder %v842, 0.0
      %vm851 = vcmp.gt.f32.partialorder %v843, 0.0
      %vm852 = vcmp.gt.f32.partialorder %v844, 0.0
      %vm853 = vcmp.gt.f32.partialorder %v845, 0.0
      %vm854 = vcmp.gt.f32.partialorder %v846, 0.0
      %vm855 = vcmp.gt.f32.partialorder %v847, 0.0
      %vm856 = vcmp.gt.f32.partialorder %v848, 0.0
      %vm857 = vcmp.gt.f32.partialorder %v849, 0.0
      %v858 = vmul.f32 %v842, 1.442695
      %v859 = vpow.pop %v858
      %v860 = vmul.f32 %v843, 1.442695
      %v861 = vpow.pop %v860
      %v862 = vmul.f32 %v844, 1.442695
      %v863 = vpow.pop %v862
      %v864 = vmul.f32 %v845, 1.442695
      %v865 = vpow.pop %v864
      %v866 = vmul.f32 %v846, 1.442695
      %v867 = vpow.pop %v866
      %v868 = vmul.f32 %v847, 1.442695
      %v869 = vpow.pop %v868
      %v870 = vmul.f32 %v848, 1.442695
      %v871 = vpow.pop %v870
      %v872 = vmul.f32 %v849, 1.442695
      %v873 = vpow.pop %v872
      %v874 = vsub.f32 %v859, 1.0
      %v875 = vsub.f32 %v861, 1.0
      %v876 = vsub.f32 %v863, 1.0
      %v877 = vsub.f32 %v865, 1.0
      %v878 = vsub.f32 %v867, 1.0
      %v879 = vsub.f32 %v869, 1.0
      %v880 = vsub.f32 %v871, 1.0
      %v881 = vsub.f32 %v873, 1.0
      %v882 = vsel %vm850, %v842, %v874
      %v883 = vsel %vm851, %v843, %v875
      %v884 = vsel %vm852, %v844, %v876
      %v885 = vsel %vm853, %v845, %v877
      %v886 = vsel %vm854, %v846, %v878
      %v887 = vsel %vm855, %v847, %v879
      %v888 = vsel %vm856, %v848, %v880
      %v889 = vsel %vm857, %v849, %v881
      %v890 = vpack.c.bf16 %v883, %v882
      %v891 = vpack.c.bf16 %v885, %v884
      %v892 = vpack.c.bf16 %v887, %v886
      %v893 = vpack.c.bf16 %v889, %v888
      %v894 = vld [vmem:[%s3] sm:$0xf]
      %v895 = vld [vmem:[%s3 + $0x4] sm:$0xf]
      %v896 = vld [vmem:[%s3 + $0x8] sm:$0xf]
      %v897 = vld [vmem:[%s3 + $0xc] sm:$0xf]
      %v898 = vld [vmem:[%s3 + $0x10] sm:$0xf]
      %v899 = vld [vmem:[%s3 + $0x14] sm:$0xf]
      %v900 = vld [vmem:[%s3 + $0x18] sm:$0xf]
      %v901 = vld [vmem:[%s3 + $0x1c] sm:$0xf]
      %v902 = vld [vmem:[%s3 + $0x20] sm:$0xf]
      %v903 = vld [vmem:[%s3 + $0x24] sm:$0xf]
      %v904 = vld [vmem:[%s3 + $0x28] sm:$0xf]
      %v905 = vld [vmem:[%s3 + $0x2c] sm:$0xf]
      %v906 = vld [vmem:[%s3 + $0x30] sm:$0xf]
      %v907 = vld [vmem:[%s3 + $0x34] sm:$0xf]
      %v908 = vld [vmem:[%s3 + $0x38] sm:$0xf]
      %v909 = vld [vmem:[%s3 + $0x3c] sm:$0xf]
      %v910 = vld [vmem:[#allocation2] sm:$0x1]
      %v912 = vlaneseq
      %v913 = vshrl.u32 %v912, 7
      %v914 = vsub.s32 0, %v913
      %v915 = vrot.slane %v910, %v914
      %v933 = vunpack.c.l.b16 %v894
      %v934 = vunpack.c.l.b16 %v895
      %v935 = vunpack.c.l.b16 %v896
      %v936 = vunpack.c.l.b16 %v897
      %v937 = vunpack.c.l.b16 %v898
      %v938 = vunpack.c.l.b16 %v899
      %v939 = vunpack.c.l.b16 %v900
      %v940 = vunpack.c.l.b16 %v901
      %v941 = vunpack.c.l.b16 %v902
      %v942 = vunpack.c.l.b16 %v903
      %v943 = vunpack.c.l.b16 %v904
      %v944 = vunpack.c.l.b16 %v905
      %v945 = vunpack.c.l.b16 %v906
      %v946 = vunpack.c.l.b16 %v907
      %v947 = vunpack.c.l.b16 %v908
      %v948 = vunpack.c.l.b16 %v909
      %v949 = vpack.c.b16 %v934, %v933
      %v950 = vpack.c.b16 %v936, %v935
      %v951 = vpack.c.b16 %v938, %v937
      %v952 = vpack.c.b16 %v940, %v939
      %v953 = vpack.c.b16 %v942, %v941
      %v954 = vpack.c.b16 %v944, %v943
      %v955 = vpack.c.b16 %v946, %v945
      %v956 = vpack.c.b16 %v948, %v947
      %965 = vmatprep.subr.bf16.mxu0 0
      %966 = vmatpush1.bf16.msra.mxu0 %v949
      %967 = vmatprep.subr.bf16.mxu0 0
      %968 = vmatpush1.bf16.msra.mxu0 %v950
      %969 = vmatprep.subr.bf16.mxu0 0
      %970 = vmatpush1.bf16.msra.mxu0 %v951
      %971 = vmatprep.subr.bf16.mxu0 0
      %972 = vmatpush1.bf16.msra.mxu0 %v952
      %973 = vmatprep.subr.bf16.mxu0 0
      %974 = vmatpush1.bf16.msra.mxu0 %v953
      %975 = vmatprep.subr.bf16.mxu0 0
      %976 = vmatpush1.bf16.msra.mxu0 %v954
      %977 = vmatprep.subr.bf16.mxu0 0
      %978 = vmatpush1.bf16.msra.mxu0 %v955
      %979 = vmatprep.subr.bf16.mxu0 0
      %980 = vmatpush1.bf16.msra.mxu0 %v956
      %981 = vmatprep.subr.bf16.mxu0 0
      %982 = vmatpush1.bf16.msra.mxu0 0
      %983 = vmatprep.subr.bf16.mxu0 0
      %984 = vmatpush1.bf16.msra.mxu0 0
      %985 = vmatprep.subr.bf16.mxu0 0
      %986 = vmatpush1.bf16.msra.mxu0 0
      %987 = vmatprep.subr.bf16.mxu0 0
      %988 = vmatpush1.bf16.msra.mxu0 0
      %989 = vmatprep.subr.bf16.mxu0 0
      %990 = vmatpush1.bf16.msra.mxu0 0
      %991 = vmatprep.subr.bf16.mxu0 0
      %992 = vmatpush1.bf16.msra.mxu0 0
      %993 = vmatprep.subr.bf16.mxu0 0
      %994 = vmatpush1.bf16.msra.mxu0 0
      %995 = vmatprep.subr.bf16.mxu0 0
      %996 = vmatpush1.bf16.msra.mxu0 0
      %997 = vmatprep.mubr.bf16.mxu0 0
      %998 = vmatmul.mubr.bf16.gmra.mrb[0].mxu0 %v890
      %v999 = vpop.f32.mrb[0].mxu0
      %v1000 = vadd.f32 %v915, %v999
      %v1001 = vpop.f32.mrb[0].mxu0
      %v1002 = vpop.f32.mrb[0].mxu0
      %v1003 = vadd.f32 %v915, %v1002
      %v1004 = vpop.f32.mrb[0].mxu0
      %1005 = vmatprep.mubr.bf16.mxu0 0
      %1006 = vmatmul.mubr.bf16.gmra.mrb[0].mxu0 %v891
      %v1007 = vpop.f32.mrb[0].mxu0
      %v1008 = vadd.f32 %v915, %v1007
      %v1009 = vpop.f32.mrb[0].mxu0
      %v1010 = vpop.f32.mrb[0].mxu0
      %v1011 = vadd.f32 %v915, %v1010
      %v1012 = vpop.f32.mrb[0].mxu0
      %1013 = vmatprep.mubr.bf16.mxu0 0
      %1014 = vmatmul.mubr.bf16.gmra.mrb[0].mxu0 %v892
      %v1015 = vpop.f32.mrb[0].mxu0
      %v1016 = vadd.f32 %v915, %v1015
      %v1017 = vpop.f32.mrb[0].mxu0
      %v1018 = vpop.f32.mrb[0].mxu0
      %v1019 = vadd.f32 %v915, %v1018
      %v1020 = vpop.f32.mrb[0].mxu0
      %1021 = vmatprep.mubr.bf16.mxu0 0
      %1022 = vmatmul.mubr.bf16.gmra.mrb[0].mxu0 %v893
      %v1023 = vpop.f32.mrb[0].mxu0
      %v1024 = vadd.f32 %v915, %v1023
      %v1025 = vpop.f32.mrb[0].mxu0
      %v1026 = vpop.f32.mrb[0].mxu0
      %v1027 = vadd.f32 %v915, %v1026
      %v1028 = vpop.f32.mrb[0].mxu0
      %1029 = vdwg.mxu0
      %vm1030 = vcmask 7168
      %1031 = vst.msk [vmem:[%s255] sm:$0xff] %vm1030, %v1000
      %1032 = vst.msk [vmem:[%s255 + $0x8] sm:$0xff] %vm1030, %v1003
      %1033 = vst.msk [vmem:[%s255 + $0x10] sm:$0xff] %vm1030, %v1008
      %1034 = vst.msk [vmem:[%s255 + $0x18] sm:$0xff] %vm1030, %v1011
      %1035 = vst.msk [vmem:[%s255 + $0x20] sm:$0xff] %vm1030, %v1016
      %1036 = vst.msk [vmem:[%s255 + $0x28] sm:$0xff] %vm1030, %v1019
      %1037 = vst.msk [vmem:[%s255 + $0x30] sm:$0xff] %vm1030, %v1024
      %1038 = vst.msk [vmem:[%s255 + $0x38] sm:$0xff] %vm1030, %v1027
      %s1039 = smul.u32 8, %s19
      %p1040 = scmp.lt.s32.totalorder %s1039, 63
      %s1041 = scalar_select %p1040, %s1039, 63
      %s1042 = smul.addr %s1041, 8
      %s1043 = scalar_lea.vmem %s6, %s1042
      // Predicated region
      $region45: #{multi_decoder_mlp_forward.1} parent=43 // pred_check
        %p1044 = pneg %p168
      $region46: #{multi_decoder_mlp_forward.1} parent=43 // pred_check_branch
        %1046 = sbr.rel (%p1044) target = $region48
      $region47: #{multi_decoder_mlp_forward.1} parent=43 // pred_region
        %s1047 = smul.u32 8, %s19
      $region48: #{multi_decoder_mlp_forward.1} parent=43 // pred_fallthru
        _
    $region44: #{multi_decoder_mlp_forward.1} parent=5 // pred_fallthru
      _
    %p1048 = scmp.le.s32.totalorder 2, %s14
    // Predicated region
    $region49: #{multi_decoder_mlp_forward.1} parent=5 // pred_check
      %p1049 = pneg %p1048
    $region50: #{multi_decoder_mlp_forward.1} parent=5 // pred_check_branch
      %1051 = sbr.rel (%p1049) target = $region52
    $region51: #{multi_decoder_mlp_forward.1} parent=5 // pred_region
      %s1052 = ssub.s32 %s14, 2
      // Predicated region
      $region53: #{multi_decoder_mlp_forward.1} parent=51 // pred_check
        %p1053 = pneg %p174
      $region54: #{multi_decoder_mlp_forward.1} parent=51 // pred_check_branch
        %1055 = sbr.rel (%p1053) target = $region56
      $region55: #{multi_decoder_mlp_forward.1} parent=51 // pred_region
        %s1056 = smul.u32 8, %s20
        %p1057 = scmp.lt.s32.totalorder %s1056, 63
        %s1058 = scalar_select %p1057, %s1056, 63
        %s1059 = smul.addr %s1058, 8
        %s1060 = scalar_lea.vmem %s6, %s1059
      $region56: #{multi_decoder_mlp_forward.1} parent=51 // pred_fallthru
        _
    $region52: #{multi_decoder_mlp_forward.1} parent=5 // pred_fallthru
      _
  $region6: #{multi_decoder_mlp_forward.1} parent=0 // loop_footer
    %s18 = sadd.s32 1, %s14
  $region7: #{multi_decoder_mlp_forward.1} parent=0 // loop_footer_branch
    %13 = sbr.rel target = $region3
  $region8: #{multi_decoder_mlp_forward.1} parent=0 // loop_exit
    _

</llo_original>
